<compile_context>
chip_gen: v7x
topology: tpu7x:2x2x1
jax: 0.10.0
libtpu: 0.0.40
codegen_flags: <defaults>
</compile_context>

<pallas_src>
import jax
import jax.numpy as jnp
from jax import lax
from jax.experimental import pallas as pl
from jax.experimental.pallas import tpu as pltpu

EPS = 1e-12


def _round_up(x, m):
    return ((x + m - 1) // m) * m


def _layer_norm_affine(y, gamma, beta):
    """Two-pass LayerNorm (f32) + affine.  y: (tm, H) f32; gamma/beta: (1, H)."""
    inv_h = jnp.float32(1.0 / y.shape[-1])
    mean = jnp.sum(y, axis=-1, keepdims=True) * inv_h          # XLU row-sum
    d = y - mean
    var = jnp.sum(d * d, axis=-1, keepdims=True) * inv_h       # XLU row-sum
    y_hat = d * lax.rsqrt(var + jnp.float32(EPS))               # EUP rsqrt
    return gamma.astype(jnp.float32) * y_hat + beta.astype(jnp.float32)


def _self_output_single_k_kernel(h_ref, x_ref, w_ref, b_ref, g_ref, beta_ref, o_ref):
    # Whole contraction in one MXU pass; no scratch, single write of the output tile.
    y = jnp.dot(h_ref[...], w_ref[...], preferred_element_type=jnp.float32)
    # bias + (eval-mode dropout == identity) + residual add, in f32
    y = y + b_ref[...].astype(jnp.float32) + x_ref[...].astype(jnp.float32)
    o_ref[...] = _layer_norm_affine(y, g_ref[...], beta_ref[...]).astype(o_ref.dtype)


def _self_output_k_tiled_kernel(h_ref, x_ref, w_ref, b_ref, g_ref, beta_ref, o_ref, acc_ref):
    # h_ref   : (TM, TK)   activation K-slice
    # x_ref   : (TM, H)    residual tile (resident across k)
    # w_ref   : (TK, H)    weight K-slice
    # b/g/beta: (1, H)
    # o_ref   : (TM, H)    output tile (resident across k)
    # acc_ref : (TM, H)    f32 accumulator scratch
    k = pl.program_id(1)

    @pl.when(k == 0)
    def _():
        # Fold bias + residual into the accumulator init (off the serialized epilogue).
        acc_ref[...] = x_ref[...].astype(jnp.float32) + b_ref[...].astype(jnp.float32)

    # Partial-K dense: MXU takes native (e.g. bf16) inputs, accumulates in f32.
    acc_ref[...] += jnp.dot(h_ref[...], w_ref[...], preferred_element_type=jnp.float32)

    @pl.when(k == pl.num_programs(1) - 1)
    def _():
        o_ref[...] = _layer_norm_affine(acc_ref[...], g_ref[...], beta_ref[...]).astype(o_ref.dtype)


def _vmem_budget_bytes():
    """Per-kernel VMEM budget: physical capacity (128 MiB on v5e/v6e, 64 MiB per core on
    v7x) minus headroom.  Used both for tile selection and as the explicit compiler limit."""
    cap = 64 << 20  # conservative default = v7x per-TensorCore VMEM
    try:
        info = pltpu.get_tpu_info()
        cap = int(getattr(info, "vmem_capacity_bytes", cap))
    except Exception:
        pass
    return max(min(cap - (16 << 20), int(cap * 0.75)), 16 << 20)


def _select_tiles(R, H, itm_act, itm_w, itm_out, budget, tile_rows=None, k_tile=None):
    """Pick (tm, tk).  Prefers a single K pass (weight streamed from HBM exactly once);
    otherwise maximizes the row tile first (weight re-streaming is num_row_tiles * H * H)."""
    tm_cap = max(8, (R // 8) * 8)  # R >= 8 here
    tm_cands = [t for t in (1024, 512, 256, 128, 64, 32, 16, 8) if t <= tm_cap]
    if tm_cap <= 1024 and tm_cap not in tm_cands:
        tm_cands = sorted(set(tm_cands + [tm_cap]), reverse=True)
    tk_cands = [t for t in (2048, 1024, 512, 256, 128) if t <= H and H % t == 0]

    def usage(tm, tk):
        u = (2 * tm * tk * itm_act        # hidden_states K-slices (double-buffered)
             + 2 * tm * H * itm_act       # residual tile
             + 2 * tk * H * itm_w         # weight K-slices
             + 2 * tm * H * itm_out       # output tile
             + 6 * H * 4)                 # bias / gamma / beta
        if tk < H:
            u += tm * H * 4               # f32 accumulator scratch
        return u

    if tile_rows is not None or k_tile is not None:
        tm = int(tile_rows) if tile_rows is not None else tm_cands[0]
        tm = max(8, min(_round_up(tm, 8), tm_cap))
        tk = int(k_tile) if k_tile is not None else H
        assert H % tk == 0, "k_tile must divide the hidden size"
        return tm, tk

    # Single K pass if a reasonably large row tile fits the VMEM budget.
    for tm in tm_cands:
        if usage(tm, H) <= budget and (tm >= 256 or tm == tm_cands[0]):
            return tm, H
    # Otherwise K-tile: largest row tile first, then largest K tile that fits.
    for tm in tm_cands:
        for tk in tk_cands:
            if usage(tm, tk) <= budget:
                return tm, tk
    return tm_cands[-1], (tk_cands[-1] if tk_cands else H)


def self_output(hidden_states, input_tensor, w, b, gamma, beta,
                *, tile_rows=None, k_tile=None, vmem_limit_bytes=None):
    """hidden_states, input_tensor: [B, S, H];  w: [H, H] (already transposed, [in, out]);
    b, gamma, beta: [H]."""
    B, S, H = hidden_states.shape
    R = B * S
    out_dtype = hidden_states.dtype

    h2 = hidden_states.reshape(R, H)
    x2 = input_tensor.reshape(R, H)
    b2 = b.reshape(1, H)
    g2 = gamma.reshape(1, H)
    beta2 = beta.reshape(1, H)

    # Ragged final row blocks are handled by the pipeline (masked stores; OOB rows cannot
    # contaminate valid rows since LayerNorm only reduces along H).  Only pad when there
    # are fewer than 8 rows, so a (8, lanes)-aligned block exists.
    R_work = R
    if R_work < 8:
        pad = 8 - R_work
        h2 = jnp.pad(h2, ((0, pad), (0, 0)))
        x2 = jnp.pad(x2, ((0, pad), (0, 0)))
        R_work = 8

    budget = _vmem_budget_bytes() if vmem_limit_bytes is None else int(vmem_limit_bytes)
    itm_act = jnp.dtype(hidden_states.dtype).itemsize
    itm_w = jnp.dtype(w.dtype).itemsize
    itm_out = jnp.dtype(out_dtype).itemsize

    tm, tk = _select_tiles(R_work, H, itm_act, itm_w, itm_out, budget,
                           tile_rows=tile_rows, k_tile=k_tile)
    # Megacore / v7x dual-TC: keep at least two row tiles when there is enough work,
    # so the 'parallel' axis can be sharded across TensorCores.
    if tile_rows is None and pl.cdiv(R_work, tm) == 1 and R_work > 256:
        tm = max(8, _round_up(pl.cdiv(R_work, 2), 8))

    num_i = pl.cdiv(R_work, tm)
    num_k = H // tk

    cost = pl.CostEstimate(
        flops=2 * R_work * H * H + 8 * R_work * H,
        transcendentals=R_work,
        bytes_accessed=(2 * R_work * H * itm_act + R_work * H * itm_out
                        + (H * H if num_k == 1 else num_i * H * H) * itm_w
                        + 3 * H * 4),
    )
    params = pltpu.CompilerParams(
        dimension_semantics=("parallel",) if num_k == 1 else ("parallel", "arbitrary"),
        vmem_limit_bytes=int(budget),
    )

    if num_k == 1:
        grid_spec = pltpu.PrefetchScalarGridSpec(
            num_scalar_prefetch=0,
            grid=(num_i,),
            in_specs=[
                pl.BlockSpec((tm, H), lambda i: (i, 0)),   # hidden_states row tile
                pl.BlockSpec((tm, H), lambda i: (i, 0)),   # residual row tile
                pl.BlockSpec((H, H), lambda i: (0, 0)),    # full weight (fetched once)
                pl.BlockSpec((1, H), lambda i: (0, 0)),    # bias
                pl.BlockSpec((1, H), lambda i: (0, 0)),    # gamma
                pl.BlockSpec((1, H), lambda i: (0, 0)),    # beta
            ],
            out_specs=pl.BlockSpec((tm, H), lambda i: (i, 0)),
            scratch_shapes=[],
        )
        kernel = _self_output_single_k_kernel
    else:
        grid_spec = pltpu.PrefetchScalarGridSpec(
            num_scalar_prefetch=0,
            grid=(num_i, num_k),
            in_specs=[
                pl.BlockSpec((tm, tk), lambda i, k: (i, k)),   # hidden_states K-slice
                pl.BlockSpec((tm, H), lambda i, k: (i, 0)),    # residual tile
                pl.BlockSpec((tk, H), lambda i, k: (k, 0)),    # weight K-slice
                pl.BlockSpec((1, H), lambda i, k: (0, 0)),     # bias
                pl.BlockSpec((1, H), lambda i, k: (0, 0)),     # gamma
                pl.BlockSpec((1, H), lambda i, k: (0, 0)),     # beta
            ],
            out_specs=pl.BlockSpec((tm, H), lambda i, k: (i, 0)),
            scratch_shapes=[pltpu.VMEM((tm, H), jnp.float32)],
        )
        kernel = _self_output_k_tiled_kernel

    out = pl.pallas_call(
        kernel,
        out_shape=jax.ShapeDtypeStruct((R_work, H), out_dtype),
        grid_spec=grid_spec,
        compiler_params=params,
        cost_estimate=cost,
    )(h2, x2, w, b2, g2, beta2)

    if R_work != R:
        out = out[:R]
    return out.reshape(B, S, H)


def _reference(hidden_states, input_tensor, w, b, gamma, beta):
    y = jnp.einsum("bsh,hk->bsk", hidden_states, w) + b
    y = y + input_tensor
    u = jnp.mean(y, axis=-1, keepdims=True)
    s = jnp.mean((y - u) ** 2, axis=-1, keepdims=True)
    y = (y - u) / jnp.sqrt(s + EPS)
    return gamma * y + beta


if __name__ == "__main__":
    key = jax.random.PRNGKey(0)
    k1, k2, k3, k4 = jax.random.split(key, 4)

    # --- Test 1: small SelfOutput shapes (single-K fast path) ---
    B, S, H = 2, 8, 32
    hidden_states = jax.random.normal(k1, (B, S, H), dtype=jnp.float32)
    input_tensor = jax.random.normal(k2, (B, S, H), dtype=jnp.float32)
    bound = 1.0 / (H ** 0.5)
    w = jax.random.uniform(k3, (H, H), minval=-bound, maxval=bound, dtype=jnp.float32)
    b = jax.random.uniform(k4, (H,), minval=-bound, maxval=bound, dtype=jnp.float32)
    gamma = jnp.ones((H,), dtype=jnp.float32)
    beta = jnp.zeros((H,), dtype=jnp.float32)

    out = jax.block_until_ready(self_output(hidden_states, input_tensor, w, b, gamma, beta))
    ref = _reference(hidden_states, input_tensor, w, b, gamma, beta)
    assert out.shape == (B, S, H)
    assert jnp.allclose(out, ref, atol=1e-5, rtol=1e-5), "single-K path mismatch vs reference"

    # --- Test 2: force the K-tiled accumulate path (H % 128 == 0, k_tile < H) ---
    H2 = 256
    kk = jax.random.split(jax.random.PRNGKey(1), 4)
    hs2 = jax.random.normal(kk[0], (B, S, H2), dtype=jnp.float32)
    it2 = jax.random.normal(kk[1], (B, S, H2), dtype=jnp.float32)
    bound2 = 1.0 / (H2 ** 0.5)
    w2 = jax.random.uniform(kk[2], (H2, H2), minval=-bound2, maxval=bound2, dtype=jnp.float32)
    b2 = jax.random.uniform(kk[3], (H2,), minval=-bound2, maxval=bound2, dtype=jnp.float32)
    g2 = jnp.ones((H2,), dtype=jnp.float32)
    be2 = jnp.zeros((H2,), dtype=jnp.float32)

    out2 = jax.block_until_ready(self_output(hs2, it2, w2, b2, g2, be2, k_tile=128))
    ref2 = _reference(hs2, it2, w2, b2, g2, be2)
    assert out2.shape == (B, S, H2)
    assert jnp.allclose(out2, ref2, atol=1e-4, rtol=1e-4), "K-tiled path mismatch vs reference"

    print("KERNEL_OK")
</pallas_src>

<mosaic_0001>
module attributes {stable_mosaic.version = 11 : i64} {
  func.func @_self_output_single_k_kernel(%arg0: i32, %arg1: memref<16x32xf32, #tpu.memory_space<vmem>>, %arg2: memref<16x32xf32, #tpu.memory_space<vmem>>, %arg3: memref<32x32xf32, #tpu.memory_space<vmem>>, %arg4: memref<1x32xf32, #tpu.memory_space<vmem>>, %arg5: memref<1x32xf32, #tpu.memory_space<vmem>>, %arg6: memref<1x32xf32, #tpu.memory_space<vmem>>, %arg7: memref<16x32xf32, #tpu.memory_space<vmem>>) attributes {dimension_semantics = [#tpu.dimension_semantics<parallel>], iteration_bounds = array<i64: 1>, scalar_prefetch = 0 : i64, scratch_operands = 0 : i64, tpu.core_type = #tpu.core_type<tc>, window_params = [{transform_indices = @transform_0, window_bounds = array<i64: 16, 32>}, {transform_indices = @transform_1, window_bounds = array<i64: 16, 32>}, {pipeline_mode = #tpu.pipeline_mode<synchronous>, transform_indices = @transform_2, window_bounds = array<i64: 32, 32>}, {pipeline_mode = #tpu.pipeline_mode<synchronous>, transform_indices = @transform_3, window_bounds = array<i64: 1, 32>}, {pipeline_mode = #tpu.pipeline_mode<synchronous>, transform_indices = @transform_4, window_bounds = array<i64: 1, 32>}, {pipeline_mode = #tpu.pipeline_mode<synchronous>, transform_indices = @transform_5, window_bounds = array<i64: 1, 32>}, {transform_indices = @transform_6, window_bounds = array<i64: 16, 32>}]} {
    %c0 = arith.constant 0 : index
    %c0_0 = arith.constant 0 : index
    %0 = vector.load %arg1[%c0, %c0_0] : memref<16x32xf32, #tpu.memory_space<vmem>>, vector<16x32xf32>
    %c0_1 = arith.constant 0 : index
    %c0_2 = arith.constant 0 : index
    %1 = vector.load %arg3[%c0_1, %c0_2] : memref<32x32xf32, #tpu.memory_space<vmem>>, vector<32x32xf32>
    %cst = arith.constant dense<0.000000e+00> : vector<16x32xf32>
    %2 = tpu.matmul %0, %1, %cst {dimension_numbers = #tpu.dot_dimension_numbers<[1], [0], [0], [1], [0, 0, 1, 1], [], []>} : vector<16x32xf32>, vector<32x32xf32>, vector<16x32xf32> -> vector<16x32xf32>
    %c0_3 = arith.constant 0 : index
    %c0_4 = arith.constant 0 : index
    %3 = vector.load %arg4[%c0_3, %c0_4] : memref<1x32xf32, #tpu.memory_space<vmem>>, vector<1x32xf32>
    %4 = vector.broadcast %3 : vector<1x32xf32> to vector<16x32xf32>
    %5 = arith.addf %2, %4 : vector<16x32xf32>
    %c0_5 = arith.constant 0 : index
    %c0_6 = arith.constant 0 : index
    %6 = vector.load %arg2[%c0_5, %c0_6] : memref<16x32xf32, #tpu.memory_space<vmem>>, vector<16x32xf32>
    %7 = arith.addf %5, %6 : vector<16x32xf32>
    %c0_7 = arith.constant 0 : index
    %c0_8 = arith.constant 0 : index
    %8 = vector.load %arg5[%c0_7, %c0_8] : memref<1x32xf32, #tpu.memory_space<vmem>>, vector<1x32xf32>
    %c0_9 = arith.constant 0 : index
    %c0_10 = arith.constant 0 : index
    %9 = vector.load %arg6[%c0_9, %c0_10] : memref<1x32xf32, #tpu.memory_space<vmem>>, vector<1x32xf32>
    %cst_11 = arith.constant dense<0.000000e+00> : vector<16xf32>
    %10 = vector.multi_reduction <add>, %7, %cst_11 [1] : vector<16x32xf32> to vector<16xf32>
    %11 = vector.shape_cast %10 : vector<16xf32> to vector<16x1xf32>
    %cst_12 = arith.constant 3.125000e-02 : f32
    %12 = vector.broadcast %cst_12 : f32 to vector<16x1xf32>
    %13 = arith.mulf %11, %12 : vector<16x1xf32>
    %14 = vector.broadcast %13 : vector<16x1xf32> to vector<16x32xf32>
    %15 = arith.subf %7, %14 : vector<16x32xf32>
    %16 = arith.mulf %15, %15 : vector<16x32xf32>
    %cst_13 = arith.constant dense<0.000000e+00> : vector<16xf32>
    %17 = vector.multi_reduction <add>, %16, %cst_13 [1] : vector<16x32xf32> to vector<16xf32>
    %18 = vector.shape_cast %17 : vector<16xf32> to vector<16x1xf32>
    %cst_14 = arith.constant 3.125000e-02 : f32
    %19 = vector.broadcast %cst_14 : f32 to vector<16x1xf32>
    %20 = arith.mulf %18, %19 : vector<16x1xf32>
    %cst_15 = arith.constant 9.99999996E-13 : f32
    %21 = vector.broadcast %cst_15 : f32 to vector<16x1xf32>
    %22 = arith.addf %20, %21 : vector<16x1xf32>
    %23 = math.rsqrt %22 : vector<16x1xf32>
    %24 = vector.broadcast %23 : vector<16x1xf32> to vector<16x32xf32>
    %25 = arith.mulf %15, %24 : vector<16x32xf32>
    %26 = vector.broadcast %8 : vector<1x32xf32> to vector<16x32xf32>
    %27 = arith.mulf %26, %25 : vector<16x32xf32>
    %28 = vector.broadcast %9 : vector<1x32xf32> to vector<16x32xf32>
    %29 = arith.addf %27, %28 : vector<16x32xf32>
    %c0_16 = arith.constant 0 : index
    %c0_17 = arith.constant 0 : index
    %30 = vector.load %arg7[%c0_16, %c0_17] : memref<16x32xf32, #tpu.memory_space<vmem>>, vector<16x32xf32>
    tpu.vector_store %arg7[%c0_16, %c0_17], %29 {strides = array<i32>} : memref<16x32xf32, #tpu.memory_space<vmem>>, vector<16x32xf32>,
    return
  }
  func.func @transform_0(%arg0: i32) -> (i32, i32) {
    %c0_i32 = arith.constant 0 : i32
    %c0_i32_0 = arith.constant 0 : i32
    return %arg0, %c0_i32 : i32, i32
  }
  func.func @transform_1(%arg0: i32) -> (i32, i32) {
    %c0_i32 = arith.constant 0 : i32
    %c0_i32_0 = arith.constant 0 : i32
    return %arg0, %c0_i32 : i32, i32
  }
  func.func @transform_2(%arg0: i32) -> (i32, i32) {
    %c0_i32 = arith.constant 0 : i32
    %c0_i32_0 = arith.constant 0 : i32
    %c0_i32_1 = arith.constant 0 : i32
    return %c0_i32, %c0_i32_0 : i32, i32
  }
  func.func @transform_3(%arg0: i32) -> (i32, i32) {
    %c0_i32 = arith.constant 0 : i32
    %c0_i32_0 = arith.constant 0 : i32
    %c0_i32_1 = arith.constant 0 : i32
    return %c0_i32, %c0_i32_0 : i32, i32
  }
  func.func @transform_4(%arg0: i32) -> (i32, i32) {
    %c0_i32 = arith.constant 0 : i32
    %c0_i32_0 = arith.constant 0 : i32
    %c0_i32_1 = arith.constant 0 : i32
    return %c0_i32, %c0_i32_0 : i32, i32
  }
  func.func @transform_5(%arg0: i32) -> (i32, i32) {
    %c0_i32 = arith.constant 0 : i32
    %c0_i32_0 = arith.constant 0 : i32
    %c0_i32_1 = arith.constant 0 : i32
    return %c0_i32, %c0_i32_0 : i32, i32
  }
  func.func @transform_6(%arg0: i32) -> (i32, i32) {
    %c0_i32 = arith.constant 0 : i32
    %c0_i32_0 = arith.constant 0 : i32
    return %arg0, %c0_i32 : i32, i32
  }
}

</mosaic_0001>

<llo_original>
// kernel: tpu_custom_call.1
$region0: #{tpu_custom_call.1}
  #allocation0 [shape = 'u32[]', space=smem, size = 0x4, offset = 0x4, fixed_abs, tag = 'smem constant byte address 0x4 - core index']
  #allocation1 [shape = 'u32[144,128]{1,0:T(1,128)}', space=vmem, size = 0x12000, scoped, tag = 'internal scratch']
  %s0 = inlined_call_operand.hbm [shape: f32[16,32], index: 0, kind: input, shape index: {}]
  %s1 = inlined_call_operand.hbm [shape: f32[16,32], index: 1, kind: input, shape index: {}]
  %s2 = inlined_call_operand.hbm [shape: f32[32,32], index: 2, kind: input, shape index: {}]
  %s3 = inlined_call_operand.vmem [shape: f32[1,32], index: 3, kind: input, shape index: {}]
  %s4 = inlined_call_operand.vmem [shape: f32[1,32], index: 4, kind: input, shape index: {}]
  %s5 = inlined_call_operand.vmem [shape: f32[1,32], index: 5, kind: input, shape index: {}]
  %s6 = inlined_call_operand.hbm [shape: f32[16,32], index: 6, kind: output, shape index: {}]
  %s7 = sld [smem:[#allocation0]]
  $region46: #{tpu_custom_call.1} parent=0
    _
  %s9 = ssub.s32 1, %s7
  %s10 = scalar_select 0, %s9, %s7
  $region1: #{tpu_custom_call.1} parent=0
    #allocation2 [shape = 'u8[8192]{0}', space=vmem, size = 0x2000, scoped, tag = 'input window, operand 0, single buffered']
    #allocation3 [shape = 's32[1]{0}', space=sflag, size = 0x4, scoped, tag = 'scoped memory for tpu_custom_call.1']
    #allocation4 [shape = 's32[1]{0}', space=sflag, size = 0x4, scoped, tag = 'scoped memory for tpu_custom_call.1']
    #allocation5 [shape = 'u8[8192]{0}', space=vmem, size = 0x2000, scoped, tag = 'input window, operand 1, single buffered']
    #allocation6 [shape = 's32[1]{0}', space=sflag, size = 0x4, scoped, tag = 'scoped memory for tpu_custom_call.1']
    #allocation7 [shape = 'u8[16384]{0}', space=vmem, size = 0x4000, scoped, tag = 'input window, operand 2, single buffered']
    #allocation8 [shape = 'u8[8192]{0}', space=vmem, size = 0x2000, scoped, tag = 'output window, operand 0, single buffered']
    %11 = vsyncpa [#allocation3], 0
    %12 = vsyncpa [#allocation6], 0
    %13 = vsyncpa [#allocation4], 0
    // Predicated region
    $region2: #{tpu_custom_call.1} parent=1 // pred_check
      _
    $region3: #{tpu_custom_call.1} parent=1 // pred_check_branch
      %15 = sbr.rel (0) target = $region5
    $region4: #{tpu_custom_call.1} parent=1 // pred_region
      %s17 = ssub.s32 256, 256
      %18 = vsyncadd [#allocation3], %s17
      %s19 = sshll.u32 [#allocation2], 4
      %s20 = int_to_ptr.vmem [resolvable:$true] %s19
      %25 = dma.hbm_to_vmem [thread:$0]  %s0, 256, %s20, [#allocation3], 128, 128, 8
    $region5: #{tpu_custom_call.1} parent=1 // pred_fallthru
      _
    // Predicated region
    $region6: #{tpu_custom_call.1} parent=1 // pred_check
      _
    $region7: #{tpu_custom_call.1} parent=1 // pred_check_branch
      %27 = sbr.rel (0) target = $region9
    $region8: #{tpu_custom_call.1} parent=1 // pred_region
      %s29 = ssub.s32 256, 256
      %30 = vsyncadd [#allocation6], %s29
      %s31 = sshll.u32 [#allocation5], 4
      %s32 = int_to_ptr.vmem [resolvable:$true] %s31
      %37 = dma.hbm_to_vmem [thread:$0]  %s1, 256, %s32, [#allocation6], 128, 128, 8
    $region9: #{tpu_custom_call.1} parent=1 // pred_fallthru
      _
    // Predicated region
    $region10: #{tpu_custom_call.1} parent=1 // pred_check
      _
    $region11: #{tpu_custom_call.1} parent=1 // pred_check_branch
      %39 = sbr.rel (0) target = $region13
    $region12: #{tpu_custom_call.1} parent=1 // pred_region
      %s41 = ssub.s32 512, 512
      %42 = vsyncadd [#allocation6], %s41
      %s43 = sshll.u32 [#allocation7], 4
      %s44 = int_to_ptr.vmem [resolvable:$true] %s43
      %49 = dma.hbm_to_vmem [thread:$0]  %s2, 512, %s44, [#allocation6], 128, 128, 8
    $region13: #{tpu_custom_call.1} parent=1 // pred_fallthru
      _
    // Predicated region
    $region14: #{tpu_custom_call.1} parent=1 // pred_check
      _
    $region15: #{tpu_custom_call.1} parent=1 // pred_check_branch
      %51 = sbr.rel (0) target = $region17
    $region16: #{tpu_custom_call.1} parent=1 // pred_region
      _
    $region17: #{tpu_custom_call.1} parent=1 // pred_fallthru
      _
    // Predicated region
    $region18: #{tpu_custom_call.1} parent=1 // pred_check
      _
    $region19: #{tpu_custom_call.1} parent=1 // pred_check_branch
      %53 = sbr.rel (0) target = $region21
    $region20: #{tpu_custom_call.1} parent=1 // pred_region
      _
    $region21: #{tpu_custom_call.1} parent=1 // pred_fallthru
      _
    // Predicated region
    $region22: #{tpu_custom_call.1} parent=1 // pred_check
      _
    $region23: #{tpu_custom_call.1} parent=1 // pred_check_branch
      %55 = sbr.rel (0) target = $region25
    $region24: #{tpu_custom_call.1} parent=1 // pred_region
      _
    $region25: #{tpu_custom_call.1} parent=1 // pred_fallthru
      _
    // Predicated region
    $region26: #{tpu_custom_call.1} parent=1 // pred_check
      _
    $region27: #{tpu_custom_call.1} parent=1 // pred_check_branch
      %57 = sbr.rel (0) target = $region29
    $region28: #{tpu_custom_call.1} parent=1 // pred_region
      %58 = dma.done [#allocation3], 256
    $region29: #{tpu_custom_call.1} parent=1 // pred_fallthru
      _
    // Predicated region
    $region30: #{tpu_custom_call.1} parent=1 // pred_check
      _
    $region31: #{tpu_custom_call.1} parent=1 // pred_check_branch
      %60 = sbr.rel (0) target = $region33
    $region32: #{tpu_custom_call.1} parent=1 // pred_region
      %61 = dma.done [#allocation6], 256
    $region33: #{tpu_custom_call.1} parent=1 // pred_fallthru
      _
    // Predicated region
    $region34: #{tpu_custom_call.1} parent=1 // pred_check
      _
    $region35: #{tpu_custom_call.1} parent=1 // pred_check_branch
      %63 = sbr.rel (0) target = $region37
    $region36: #{tpu_custom_call.1} parent=1 // pred_region
      %64 = dma.done [#allocation6], 512
    $region37: #{tpu_custom_call.1} parent=1 // pred_fallthru
      _
    %v65 = vld [vmem:[#allocation2] sm:$0xff]
    %v66 = vld [vmem:[#allocation2 + $0x8] sm:$0xff]
    %v67 = vld [vmem:[#allocation7] sm:$0xff]
    %v68 = vld [vmem:[#allocation7 + $0x8] sm:$0xff]
    %v69 = vld [vmem:[#allocation7 + $0x10] sm:$0xff]
    %v70 = vld [vmem:[#allocation7 + $0x18] sm:$0xff]
    %v71 = vld [vmem:[%s3] sm:$0x1]
    %v73 = vlaneseq
    %v74 = vshrl.u32 %v73, 7
    %v75 = vsub.s32 0, %v74
    %v76 = vrot.slane %v71, %v75
    %vm78 = vcmask 261120
    %v80 = vsel %vm78, %v65, 0
    %v83 = vsel %vm78, %v66, 0
    %85 = vmatprep.subr.mxu0 0.0
    %86 = vmatpush1.msra.mxu0 %v67
    %87 = vmatprep.subr.mxu0 0.0
    %88 = vmatpush1.msra.mxu0 %v68
    %89 = vmatprep.subr.mxu0 0.0
    %90 = vmatpush1.msra.mxu0 %v69
    %91 = vmatprep.subr.mxu0 0.0
    %92 = vmatpush1.msra.mxu0 %v70
    %93 = vmatprep.subr.mxu0 0.0
    %94 = vmatpush1.msra.mxu0 0.0
    %95 = vmatprep.subr.mxu0 0.0
    %96 = vmatpush1.msra.mxu0 0.0
    %97 = vmatprep.subr.mxu0 0.0
    %98 = vmatpush1.msra.mxu0 0.0
    %99 = vmatprep.subr.mxu0 0.0
    %100 = vmatpush1.msra.mxu0 0.0
    %101 = vmatprep.subr.mxu0 0.0
    %102 = vmatpush1.msra.mxu0 0.0
    %103 = vmatprep.subr.mxu0 0.0
    %104 = vmatpush1.msra.mxu0 0.0
    %105 = vmatprep.subr.mxu0 0.0
    %106 = vmatpush1.msra.mxu0 0.0
    %107 = vmatprep.subr.mxu0 0.0
    %108 = vmatpush1.msra.mxu0 0.0
    %109 = vmatprep.subr.mxu0 0.0
    %110 = vmatpush1.msra.mxu0 0.0
    %111 = vmatprep.subr.mxu0 0.0
    %112 = vmatpush1.msra.mxu0 0.0
    %113 = vmatprep.subr.mxu0 0.0
    %114 = vmatpush1.msra.mxu0 0.0
    %115 = vmatprep.subr.mxu0 0.0
    %116 = vmatpush1.msra.mxu0 0.0
    %117 = vmatprep.subr.mxu0 0.0
    %118 = vmatpush1.msra.mxu0 0.0
    %119 = vmatprep.subr.mxu0 0.0
    %120 = vmatpush1.msra.mxu0 0.0
    %121 = vmatprep.subr.mxu0 0.0
    %122 = vmatpush1.msra.mxu0 0.0
    %123 = vmatprep.subr.mxu0 0.0
    %124 = vmatpush1.msra.mxu0 0.0
    %125 = vmatprep.subr.mxu0 0.0
    %126 = vmatpush1.msra.mxu0 0.0
    %127 = vmatprep.subr.mxu0 0.0
    %128 = vmatpush1.msra.mxu0 0.0
    %129 = vmatprep.subr.mxu0 0.0
    %130 = vmatpush1.msra.mxu0 0.0
    %131 = vmatprep.subr.mxu0 0.0
    %132 = vmatpush1.msra.mxu0 0.0
    %133 = vmatprep.subr.mxu0 0.0
    %134 = vmatpush1.msra.mxu0 0.0
    %135 = vmatprep.subr.mxu0 0.0
    %136 = vmatpush1.msra.mxu0 0.0
    %137 = vmatprep.subr.mxu0 0.0
    %138 = vmatpush1.msra.mxu0 0.0
    %139 = vmatprep.subr.mxu0 0.0
    %140 = vmatpush1.msra.mxu0 0.0
    %141 = vmatprep.subr.mxu0 0.0
    %142 = vmatpush1.msra.mxu0 0.0
    %143 = vmatprep.subr.mxu0 0.0
    %144 = vmatpush1.msra.mxu0 0.0
    %145 = vmatprep.subr.mxu0 0.0
    %146 = vmatpush1.msra.mxu0 0.0
    %147 = vmatprep.subr.mxu0 0.0
    %148 = vmatpush1.msra.mxu0 0.0
    %149 = vmatprep.mubr.f32.mxu0 0.0
    %150 = vmatmul.mubr.f32.gmra.mrb[0].mxu0 %v80
    %v151 = vpop.f32.mrb[0].mxu0
    %v152 = vadd.f32 %v76, %v151
    %v153 = vpop.f32.mrb[0].mxu0
    %154 = vmatprep.mubr.f32.mxu0 0.0
    %155 = vmatmul.mubr.f32.gmra.mrb[0].mxu0 %v83
    %v156 = vpop.f32.mrb[0].mxu0
    %v157 = vadd.f32 %v76, %v156
    %v158 = vpop.f32.mrb[0].mxu0
    %159 = vdwg.mxu0
    %v160 = vld [vmem:[#allocation5] sm:$0xff]
    %v161 = vld [vmem:[#allocation5 + $0x8] sm:$0xff]
    %v162 = vadd.f32 %v152, %v160
    %v163 = vadd.f32 %v157, %v161
    %v164 = vld [vmem:[%s4] sm:$0x1]
    %v165 = vld [vmem:[%s5] sm:$0x1]
    %v166 = vsel %vm78, %v162, 0.0
    %167 = vadd.xlane.f32.xlu0 %v166
    %v168 = vpop.xlane.xlu0 %167
    %v169 = vsel %vm78, %v163, 0.0
    %170 = vadd.xlane.f32.xlu0 %v169
    %v171 = vpop.xlane.xlu0 %170
    %v172 = vmul.f32 %v168, 0.03125
    %v173 = vmul.f32 %v171, 0.03125
    %v174 = vsub.f32 %v162, %v172
    %v175 = vsub.f32 %v163, %v173
    %v176 = vmul.f32 %v174, %v174
    %v177 = vmul.f32 %v175, %v175
    %v178 = vsel %vm78, %v176, 0.0
    %179 = vadd.xlane.f32.xlu0 %v178
    %v180 = vpop.xlane.xlu0 %179
    %v181 = vsel %vm78, %v177, 0.0
    %182 = vadd.xlane.f32.xlu0 %v181
    %v183 = vpop.xlane.xlu0 %182
    %v184 = vmul.f32 %v180, 0.03125
    %v185 = vmul.f32 %v183, 0.03125
    %v186 = vadd.f32 %v184, 1e-12
    %v187 = vadd.f32 %v185, 1e-12
    %v188 = vrsqrt.pop %v186
    %v189 = vrsqrt.pop %v187
    %v190 = vmul.f32 %v174, %v188
    %v191 = vmul.f32 %v175, %v189
    %v193 = vlaneseq
    %v194 = vshrl.u32 %v193, 7
    %v195 = vsub.s32 0, %v194
    %v196 = vrot.slane %v164, %v195
    %v198 = vmul.f32 %v196, %v190
    %v199 = vmul.f32 %v196, %v191
    %v201 = vlaneseq
    %v202 = vshrl.u32 %v201, 7
    %v203 = vsub.s32 0, %v202
    %v204 = vrot.slane %v165, %v203
    %v206 = vadd.f32 %v198, %v204
    %v207 = vadd.f32 %v199, %v204
    %208 = vst.msk [vmem:[#allocation8] sm:$0xff] %vm78, %v206
    %209 = vst.msk [vmem:[#allocation8 + $0x8] sm:$0xff] %vm78, %v207
    // Predicated region
    $region38: #{tpu_custom_call.1} parent=1 // pred_check
      _
    $region39: #{tpu_custom_call.1} parent=1 // pred_check_branch
      %211 = sbr.rel (0) target = $region41
    $region40: #{tpu_custom_call.1} parent=1 // pred_region
      %s213 = ssub.s32 256, 256
      %214 = vsyncadd [#allocation4], %s213
      %s215 = sshll.u32 [#allocation8], 4
      %s216 = int_to_ptr.vmem [resolvable:$true] %s215
      %221 = dma.vmem_to_hbm [thread:$0]  %s216, 256, %s6, [#allocation4], 128, 128, 8
    $region41: #{tpu_custom_call.1} parent=1 // pred_fallthru
      _
    // Predicated region
    $region42: #{tpu_custom_call.1} parent=1 // pred_check
      _
    $region43: #{tpu_custom_call.1} parent=1 // pred_check_branch
      %223 = sbr.rel (0) target = $region45
    $region44: #{tpu_custom_call.1} parent=1 // pred_region
      %224 = dma.done [#allocation4], 256
    $region45: #{tpu_custom_call.1} parent=1 // pred_fallthru
      _
    %225 = vsyncpa [#allocation3], 1
    %226 = vsyncpa [#allocation6], 1
    %227 = vsyncpa [#allocation4], 1

</llo_original>
